<compile_context>
chip_gen: v7x
topology: tpu7x:2x2x1
jax: 0.10.0
libtpu: 0.0.40
codegen_flags: <defaults>
</compile_context>

<pallas_src>
import functools

import jax
import jax.numpy as jnp
from jax.experimental import pallas as pl
from jax.experimental.pallas import tpu as pltpu


# ---------------------------------------------------------------------------
# 1-D linear-interpolation matrices (PyTorch half-pixel / align_corners=False).
# ---------------------------------------------------------------------------
def _interp_matrix(in_size: int, out_size: int) -> jnp.ndarray:
    """Dense (out_size, in_size) matrix matching F.interpolate(..., mode='*linear',
    align_corners=False, antialias=False)."""
    scale = in_size / out_size
    j = jnp.arange(out_size, dtype=jnp.float32)
    src = jnp.maximum((j + 0.5) * scale - 0.5, 0.0)      # PyTorch clamps negative coords
    i0 = jnp.minimum(jnp.floor(src).astype(jnp.int32), in_size - 1)
    i1 = jnp.minimum(i0 + 1, in_size - 1)
    lam = src - i0.astype(jnp.float32)
    oh0 = jax.nn.one_hot(i0, in_size, dtype=jnp.float32)
    oh1 = jax.nn.one_hot(i1, in_size, dtype=jnp.float32)
    return (1.0 - lam)[:, None] * oh0 + lam[:, None] * oh1


# ---------------------------------------------------------------------------
# Kernels.  grid = (C/Cb [parallel], S/Sblk [parallel], D/Dt [arbitrary reduction])
# ---------------------------------------------------------------------------
def _d_contract_and_store(md_ref, t2d, out_ref, acc, *, single_k):
    """Single block-diagonal D matmul (Cb*Do, Cb*Dt) @ (Cb*Dt, S), accumulate, store."""
    part = jnp.dot(md_ref[0], t2d, preferred_element_type=jnp.float32)    # (Cb*Do, S)
    cb, do, s = out_ref.shape
    if single_k:
        # nk == 1 fast path: no accumulator scratch, no zero-init / finalize copy.
        out_ref[...] = part.reshape(cb, do, s).astype(out_ref.dtype)
    else:
        acc_ref = acc[0]
        k = pl.program_id(2)

        @pl.when(k == 0)
        def _init():
            acc_ref[...] = jnp.zeros_like(acc_ref)

        acc_ref[...] += part

        @pl.when(k == pl.num_programs(2) - 1)
        def _finalize():
            out_ref[...] = acc_ref[...].reshape(cb, do, s).astype(out_ref.dtype)


def _resize3d_fused_kernel(mhw_ref, md_ref, vol_ref, out_ref, *acc, single_k):
    """Fused H/W Kronecker path: one lane-dense matmul, zero in-kernel transposes."""
    cb, dt, hw = vol_ref.shape
    t2d = jnp.dot(vol_ref[...].reshape(cb * dt, hw), mhw_ref[...],
                  preferred_element_type=jnp.float32)                     # (Cb*Dt, S)
    _d_contract_and_store(md_ref, t2d, out_ref, acc, single_k=single_k)


def _resize3d_separable_kernel(mh_ref, mw_ref, md_ref, vol_ref, out_ref, *acc, single_k):
    """Separable fallback for large spatial sizes (no raw-input transpose; W first)."""
    cb, dt, h, w = vol_ref.shape
    ho = mh_ref.shape[1]
    wo = mw_ref.shape[1]
    v = vol_ref[...]                                                       # native dtype
    t = jnp.dot(v.reshape(cb * dt * h, w), mw_ref[...],
                preferred_element_type=jnp.float32)                        # (Cb*Dt*H, Wo)
    t = jnp.swapaxes(t.reshape(cb * dt, h, wo), 1, 2)                      # (Cb*Dt, Wo, H)
    t = jnp.dot(t.reshape(cb * dt * wo, h), mh_ref[...],
                preferred_element_type=jnp.float32)                        # (Cb*Dt*Wo, Ho)
    # TODO(synk): the (Wo,Ho)->(Ho,Wo) swap could be deferred to a per-tile finalize.
    t = jnp.swapaxes(t.reshape(cb * dt, wo, ho), 1, 2)                     # (Cb*Dt, Ho, Wo)
    t2d = t.reshape(cb * dt, ho * wo)
    _d_contract_and_store(md_ref, t2d, out_ref, acc, single_k=single_k)


# ---------------------------------------------------------------------------
# Tiling / VMEM policy.
# ---------------------------------------------------------------------------
_FUSED_WEIGHT_MAX_BYTES = 32 * 1024 * 1024   # max size of the materialized mh (x) mw weight


def _vmem_limits():
    """Generation-aware (per-step budget, scoped VMEM limit)."""
    try:
        cap = int(pltpu.get_tpu_info().vmem_capacity_bytes)
    except Exception:                      # unknown part: assume the smallest (v7x, 64 MiB)
        cap = 64 * 1024 * 1024
    limit = min((cap * 3) // 4, 96 * 1024 * 1024)   # v5e/v6e -> 96 MiB, v7x -> 48 MiB
    return limit // 2, limit


def _divisors_desc(n):
    return [d for d in range(n, 0, -1) if n % d == 0]


def _tile_bytes(shape, esize):
    """Bytes of a VMEM tile including (8,128) sublane/lane padding."""
    lead = 1
    for d in shape[:-2]:
        lead *= d
    sub = -(-shape[-2] // 8) * 8
    lane = -(-shape[-1] // 128) * 128
    return lead * sub * lane * esize


def _step_bytes(cb, dt, s, *, fused, D, H, W, Do, Ho, Wo, esize):
    """Approximate per-grid-step VMEM footprint (double-buffered tiles + live f32)."""
    hw, single_k = H * W, dt == D
    b = 2 * _tile_bytes((1, cb * Do, cb * dt), 4)                 # block-diag D weight
    b += 2 * _tile_bytes((cb, Do, s), esize)                      # output tile
    if not single_k:
        b += _tile_bytes((cb * Do, s), 4)                         # f32 accumulator
    if fused:
        b += 2 * _tile_bytes((cb, dt, hw), esize)                 # input tile
        b += 2 * _tile_bytes((hw, s), 4)                          # Kronecker weight tile
        b += _tile_bytes((cb * dt, s), 4) + _tile_bytes((cb * Do, s), 4)
    else:
        b += 2 * _tile_bytes((cb, dt, H, W), esize)
        b += 2 * (_tile_bytes((H, Ho), 4) + _tile_bytes((W, Wo), 4))
        inter = [_tile_bytes(x, 4) for x in
                 ((cb * dt * H, Wo), (cb * dt * Wo, H), (cb * dt * Wo, Ho),
                  (cb * dt, Ho * Wo), (cb * Do, Ho * Wo))]
        b += max(inter[i] + inter[i + 1] for i in range(len(inter) - 1))
    return b


def _pick_tiling(C, D, H, W, Do, Ho, Wo, esize, fused, budget):
    hw, s_total = H * W, Ho * Wo

    # D tiles: full D preferred (nk == 1 fast path); tiled-D blocks on the fused path
    # must be a multiple of 8 sublanes (input is laid out (C, D, H*W) there).
    dt_cands = [D] + [d for d in _divisors_desc(D)
                      if d != D and (not fused or d % 8 == 0)]

    def cb_cands(dt):
        # Keep >= 2 blocks on the parallel C axis when C >= 2 (v7x megacore), bound the
        # block-diagonal D-matmul waste, and only fold channels when the merge is free.
        cands = [cb for cb in _divisors_desc(C)
                 if (C < 2 or C // cb >= 2)
                 and (cb == 1 or not fused or dt % 8 == 0)
                 and (cb - 1) * Do <= 4 * max(hw, 128)]
        return cands or [1]

    # Output-spatial tiles (fused path): full, else lane-aligned multiples of 128.
    if fused:
        s_cands = [s_total] + [s for s in _divisors_desc(s_total)
                               if s != s_total and s % 128 == 0]
    else:
        s_cands = [s_total]

    def fits(cb, dt, s):
        return _step_bytes(cb, dt, s, fused=fused, D=D, H=H, W=W,
                           Do=Do, Ho=Ho, Wo=Wo, esize=esize) <= budget

    choice = None
    for dt in dt_cands:                       # prefer full D (no accumulator)
        for cb in cb_cands(dt):               # then the largest channel block
            for s in s_cands:                 # then the widest spatial slab
                if fits(cb, dt, s):
                    choice = (cb, dt, s)
                    break
            if choice:
                break
        if choice:
            break
    if choice is None:
        # TODO(synk): tile Do / band the interpolation matrices for extreme shapes.
        choice = (1, dt_cands[-1], s_cands[-1])
    cb, dt, s = choice

    # Avoid a single-step grid for non-trivial volumes so DMA overlaps compute (v5e).
    if (C // cb) * (D // dt) * (s_total // s) == 1 and C * D * hw * esize > (2 << 20):
        if D % 2 == 0 and (not fused or (D // 2) % 8 == 0):
            dt = D // 2
        elif fused and s_total % 256 == 0:
            s = s_total // 2
    return cb, dt, s


# ---------------------------------------------------------------------------
# Public wrapper — equivalent of Resize3D(size).forward(volume).
# ---------------------------------------------------------------------------
def resize3d(volume: jnp.ndarray, size, interpolation: str = 'trilinear', *,
             weight_dtype=None, force_separable: bool = False,
             channel_block=None, d_block=None, spatial_block=None) -> jnp.ndarray:
    if interpolation != 'trilinear':
        # TODO(synk): only trilinear (the module's default) is implemented.
        raise ValueError('Only trilinear interpolation is implemented.')
    size = tuple(int(s) for s in size)
    if len(size) != 3:
        raise ValueError('Size must be a tuple of three integers (D, H, W).')

    orig_ndim = volume.ndim
    lead_shape = None
    if orig_ndim == 3:
        vol = volume[None]                                        # (1, D, H, W)
    elif orig_ndim == 4:
        vol = volume
    elif orig_ndim == 5:                                          # (N, C, D, H, W)
        lead_shape = volume.shape[:2]
        vol = volume.reshape((lead_shape[0] * lead_shape[1],) + volume.shape[2:])
    else:
        raise ValueError('volume must be (N, C, D, H, W), (C, D, H, W) or (D, H, W)')
    if not jnp.issubdtype(vol.dtype, jnp.floating):
        raise TypeError('Trilinear resize requires a floating-point volume.')

    C, D, H, W = vol.shape
    Do, Ho, Wo = size
    HW, S_total = H * W, Ho * Wo
    esize = jnp.dtype(vol.dtype).itemsize
    wdt = jnp.float32 if weight_dtype is None else jnp.dtype(weight_dtype)

    budget, vmem_limit = _vmem_limits()
    fused = (not force_separable) and (HW * S_total * 4 <= _FUSED_WEIGHT_MAX_BYTES)

    cb, dt, s_blk = _pick_tiling(C, D, H, W, Do, Ho, Wo, esize, fused, budget)
    if channel_block is not None:
        cb = int(channel_block)
        if C % cb != 0:
            raise ValueError('channel_block must divide C')
    if d_block is not None:
        dt = int(d_block)
        if D % dt != 0 or (fused and dt != D and dt % 8 != 0):
            raise ValueError('d_block must divide D (multiple of 8 when tiled, fused path)')
    if spatial_block is not None:
        if not fused:
            raise ValueError('spatial_block only applies to the fused path')
        s_blk = int(spatial_block)
        if S_total % s_blk != 0 or (s_blk != S_total and s_blk % 128 != 0):
            raise ValueError('spatial_block must divide Ho*Wo and be a multiple of 128')
    if not fused:
        s_blk = S_total

    nc, ns, nk = C // cb, S_total // s_blk, D // dt
    single_k = nk == 1

    # Interpolation weights (built once, in the wrapper).
    mh = _interp_matrix(H, Ho)                                    # (Ho, H)
    mw = _interp_matrix(W, Wo)                                    # (Wo, W)
    md = _interp_matrix(D, Do)                                    # (Do, D)

    # Per-D-tile, block-diagonal-over-channels weight for the single D matmul:
    #   md_bd[k] = I_cb (x) md[:, k*dt:(k+1)*dt]   ->   (cb*Do, cb*dt)
    md_k = md.reshape(Do, nk, dt).transpose(1, 0, 2)              # (nk, Do, dt)
    md_bd = jnp.einsum('ab,kcd->kacbd', jnp.eye(cb, dtype=jnp.float32),
                       md_k).reshape(nk, cb * Do, cb * dt)

    out_spec = pl.BlockSpec((cb, Do, s_blk), lambda c, s, k: (c, 0, s))
    if fused:
        # Kronecker H/W weight: row (h*W + w), column (ho*Wo + wo).
        m_hw = jnp.einsum('ah,bw->hwab', mh, mw).reshape(HW, S_total).astype(wdt)
        kernel = functools.partial(_resize3d_fused_kernel, single_k=single_k)
        in_specs = [
            pl.BlockSpec((HW, s_blk), lambda c, s, k: (0, s)),
            pl.BlockSpec((1, cb * Do, cb * dt), lambda c, s, k: (k, 0, 0)),
            pl.BlockSpec((cb, dt, HW), lambda c, s, k: (c, k, 0)),
        ]
        operands = (m_hw, md_bd, vol.reshape(C, D, HW))
        mm_flops = 2 * C * D * HW * S_total
        wbytes = 4 * (Do * D + HW * S_total)
    else:
        kernel = functools.partial(_resize3d_separable_kernel, single_k=single_k)
        in_specs = [
            pl.BlockSpec((H, Ho), lambda c, s, k: (0, 0)),
            pl.BlockSpec((W, Wo), lambda c, s, k: (0, 0)),
            pl.BlockSpec((1, cb * Do, cb * dt), lambda c, s, k: (k, 0, 0)),
            pl.BlockSpec((cb, dt, H, W), lambda c, s, k: (c, k, 0, 0)),
        ]
        operands = (mh.T.astype(wdt), mw.T.astype(wdt), md_bd, vol)
        mm_flops = 2 * C * D * (H * W * Wo + Wo * H * Ho)
        wbytes = 4 * (Do * D + Ho * H + Wo * W)

    cost = pl.CostEstimate(
        flops=int(mm_flops + 2 * C * Do * D * S_total),
        transcendentals=0,
        bytes_accessed=int(C * D * HW * esize + C * Do * S_total * esize + wbytes),
    )
    scratch = [] if single_k else [pltpu.VMEM((cb * Do, s_blk), jnp.float32)]

    out = pl.pallas_call(
        kernel,
        out_shape=jax.ShapeDtypeStruct((C, Do, S_total), vol.dtype),
        grid_spec=pltpu.PrefetchScalarGridSpec(
            num_scalar_prefetch=0,
            grid=(nc, ns, nk),
            in_specs=in_specs,
            out_specs=out_spec,
            scratch_shapes=scratch,
        ),
        compiler_params=pltpu.CompilerParams(
            dimension_semantics=("parallel", "parallel", "arbitrary"),
            vmem_limit_bytes=vmem_limit,
        ),
        cost_estimate=cost,
    )(*operands)

    out = out.reshape(C, Do, Ho, Wo)                              # free row-major reshape
    if orig_ndim == 3:
        out = out[0]
    elif orig_ndim == 5:
        out = out.reshape(lead_shape + (Do, Ho, Wo))
    return out


# ---------------------------------------------------------------------------
# Pure-JAX references for validation.
# ---------------------------------------------------------------------------
def _resize3d_ref(volume, size):
    orig_ndim = volume.ndim
    vol = volume[None] if orig_ndim == 3 else volume
    C, D, H, W = vol.shape
    Do, Ho, Wo = size
    md, mh, mw = _interp_matrix(D, Do), _interp_matrix(H, Ho), _interp_matrix(W, Wo)
    t = jnp.einsum('cdhw,xw->cdhx', vol.astype(jnp.float32), mw)
    t = jnp.einsum('cdhx,yh->cdyx', t, mh)
    t = jnp.einsum('cdyx,zd->czyx', t, md)
    t = t.astype(vol.dtype)
    return t[0] if orig_ndim == 3 else t


def _torch_style_ref(volume, size):
    orig_ndim = volume.ndim
    vol = volume[None] if orig_ndim == 3 else volume

    def axis_resize(x, axis, out_size):
        in_size = x.shape[axis]
        scale = in_size / out_size
        j = jnp.arange(out_size, dtype=jnp.float32)
        src = jnp.maximum((j + 0.5) * scale - 0.5, 0.0)
        i0 = jnp.minimum(jnp.floor(src).astype(jnp.int32), in_size - 1)
        i1 = jnp.minimum(i0 + 1, in_size - 1)
        lam = src - i0.astype(jnp.float32)
        x0 = jnp.take(x, i0, axis=axis)
        x1 = jnp.take(x, i1, axis=axis)
        bshape = [1] * x.ndim
        bshape[axis] = out_size
        lam = lam.reshape(bshape)
        return x0 * (1.0 - lam) + x1 * lam

    y = vol.astype(jnp.float32)
    for axis, s in zip((1, 2, 3), size):
        y = axis_resize(y, axis, s)
    y = y.astype(vol.dtype)
    return y[0] if orig_ndim == 3 else y


if __name__ == "__main__":
    key = jax.random.PRNGKey(0)
    x = jax.random.normal(key, (4, 16, 16, 16), dtype=jnp.float32)   # (C, D, H, W)
    target = (8, 24, 32)                                             # down D, up H/W

    # Main (fused Kronecker) path: full-D, no accumulator, lane-dense output slab.
    y = jax.block_until_ready(resize3d(x, target))
    assert y.shape == (4,) + target, y.shape

    y_ref = _resize3d_ref(x, target)
    assert jnp.allclose(y, y_ref, atol=1e-5, rtol=1e-5)
    y_ref2 = _torch_style_ref(x, target)
    assert jnp.allclose(y, y_ref2, atol=1e-5, rtol=1e-5)

    # Tiled D-reduction (accumulator) path.
    y_tiled = jax.block_until_ready(resize3d(x, target, d_block=8))
    assert jnp.allclose(y_tiled, y_ref, atol=1e-5, rtol=1e-5)

    # Output-spatial tiling of the fused path.
    y_sp = jax.block_until_ready(resize3d(x, target, spatial_block=128))
    assert jnp.allclose(y_sp, y_ref, atol=1e-5, rtol=1e-5)

    # Separable fallback path (used automatically for large spatial shapes).
    y_sep = jax.block_until_ready(resize3d(x, target, force_separable=True))
    assert jnp.allclose(y_sep, y_ref, atol=1e-5, rtol=1e-5)

    # Bare (D, H, W) input + constant preservation (trilinear preserves constants).
    ones = jnp.ones((16, 16, 16), dtype=jnp.float32)
    y_ones = jax.block_until_ready(resize3d(ones, target))
    assert y_ones.shape == target
    assert jnp.allclose(y_ones, 1.0, atol=1e-6)

    print("KERNEL_OK")
</pallas_src>

<mosaic_0001>
module attributes {stable_mosaic.version = 11 : i64} {
  func.func @_resize3d_fused_kernel(%arg0: i32, %arg1: i32, %arg2: i32, %arg3: memref<256x768xf32, #tpu.memory_space<vmem>>, %arg4: memref<1x16x32xf32, #tpu.memory_space<vmem>>, %arg5: memref<2x16x256xf32, #tpu.memory_space<vmem>>, %arg6: memref<2x8x768xf32, #tpu.memory_space<vmem>>) attributes {dimension_semantics = [#tpu.dimension_semantics<parallel>, #tpu.dimension_semantics<parallel>, #tpu.dimension_semantics<arbitrary>], iteration_bounds = array<i64: 2, 1, 1>, scalar_prefetch = 0 : i64, scratch_operands = 0 : i64, tpu.core_type = #tpu.core_type<tc>, window_params = [{transform_indices = @transform_0, window_bounds = array<i64: 256, 768>}, {transform_indices = @transform_1, window_bounds = array<i64: 1, 16, 32>}, {transform_indices = @transform_2, window_bounds = array<i64: 2, 16, 256>}, {transform_indices = @transform_3, window_bounds = array<i64: 2, 8, 768>}]} {
    %c0 = arith.constant 0 : index
    %c0_0 = arith.constant 0 : index
    %c0_1 = arith.constant 0 : index
    %0 = vector.load %arg5[%c0, %c0_0, %c0_1] : memref<2x16x256xf32, #tpu.memory_space<vmem>>, vector<2x16x256xf32>
    %1 = vector.shape_cast %0 : vector<2x16x256xf32> to vector<32x256xf32>
    %c0_2 = arith.constant 0 : index
    %c0_3 = arith.constant 0 : index
    %2 = vector.load %arg3[%c0_2, %c0_3] : memref<256x768xf32, #tpu.memory_space<vmem>>, vector<256x768xf32>
    %cst = arith.constant dense<0.000000e+00> : vector<32x768xf32>
    %3 = tpu.matmul %1, %2, %cst {dimension_numbers = #tpu.dot_dimension_numbers<[1], [0], [0], [1], [0, 0, 1, 1], [], []>} : vector<32x256xf32>, vector<256x768xf32>, vector<32x768xf32> -> vector<32x768xf32>
    %c0_4 = arith.constant 0 : index
    %c0_5 = arith.constant 0 : index
    %c0_6 = arith.constant 0 : index
    %4 = vector.load %arg4[%c0_4, %c0_5, %c0_6] : memref<1x16x32xf32, #tpu.memory_space<vmem>>, vector<1x16x32xf32>
    %5 = vector.shape_cast %4 : vector<1x16x32xf32> to vector<16x32xf32>
    %cst_7 = arith.constant dense<0.000000e+00> : vector<16x768xf32>
    %6 = tpu.matmul %5, %3, %cst_7 {dimension_numbers = #tpu.dot_dimension_numbers<[1], [0], [0], [1], [0, 0, 1, 1], [], []>} : vector<16x32xf32>, vector<32x768xf32>, vector<16x768xf32> -> vector<16x768xf32>
    %7 = vector.shape_cast %6 : vector<16x768xf32> to vector<2x8x768xf32>
    %c0_8 = arith.constant 0 : index
    %c0_9 = arith.constant 0 : index
    %c0_10 = arith.constant 0 : index
    %8 = vector.load %arg6[%c0_8, %c0_9, %c0_10] : memref<2x8x768xf32, #tpu.memory_space<vmem>>, vector<2x8x768xf32>
    tpu.vector_store %arg6[%c0_8, %c0_9, %c0_10], %7 {strides = array<i32>} : memref<2x8x768xf32, #tpu.memory_space<vmem>>, vector<2x8x768xf32>,
    return
  }
  func.func @transform_0(%arg0: i32, %arg1: i32, %arg2: i32) -> (i32, i32) {
    %c0_i32 = arith.constant 0 : i32
    %c0_i32_0 = arith.constant 0 : i32
    return %c0_i32, %arg1 : i32, i32
  }
  func.func @transform_1(%arg0: i32, %arg1: i32, %arg2: i32) -> (i32, i32, i32) {
    %c0_i32 = arith.constant 0 : i32
    %c0_i32_0 = arith.constant 0 : i32
    %c0_i32_1 = arith.constant 0 : i32
    return %arg2, %c0_i32, %c0_i32_0 : i32, i32, i32
  }
  func.func @transform_2(%arg0: i32, %arg1: i32, %arg2: i32) -> (i32, i32, i32) {
    %c0_i32 = arith.constant 0 : i32
    %c0_i32_0 = arith.constant 0 : i32
    return %arg0, %arg2, %c0_i32 : i32, i32, i32
  }
  func.func @transform_3(%arg0: i32, %arg1: i32, %arg2: i32) -> (i32, i32, i32) {
    %c0_i32 = arith.constant 0 : i32
    %c0_i32_0 = arith.constant 0 : i32
    return %arg0, %c0_i32, %arg1 : i32, i32, i32
  }
}

</mosaic_0001>

<llo_original>
// kernel: tpu_custom_call.1
$region0: #{tpu_custom_call.1}
  #allocation0 [shape = 'u32[]', space=smem, size = 0x4, offset = 0x4, fixed_abs, tag = 'smem constant byte address 0x4 - core index']
  #allocation1 [shape = 'u32[144,128]{1,0:T(1,128)}', space=vmem, size = 0x12000, scoped, tag = 'internal scratch']
  %s0 = inlined_call_operand.hbm [shape: f32[256,768], index: 0, kind: input, shape index: {}]
  %s1 = inlined_call_operand.hbm [shape: f32[1,16,32], index: 1, kind: input, shape index: {}]
  %s2 = inlined_call_operand.hbm [shape: f32[4,16,256], index: 2, kind: input, shape index: {}]
  %s3 = inlined_call_operand.hbm [shape: f32[4,8,768], index: 3, kind: output, shape index: {}]
  %s4 = sld [smem:[#allocation0]]
  $region57: #{tpu_custom_call.1} parent=0
    _
  %s6 = ssub.s32 1, %s4
  %s7 = scalar_select 0, %s6, %s4
  $region1: #{tpu_custom_call.1} parent=0
    #allocation2 [shape = 'u8[786432]{0}', space=vmem, size = 0xc0000, scoped, tag = 'input window, operand 0, single buffered']
    #allocation3 [shape = 's32[2]{0}', space=sflag, size = 0x8, scoped, tag = 'scoped memory for tpu_custom_call.1']
    #allocation4 [shape = 's32[2]{0}', space=sflag, size = 0x8, scoped, tag = 'scoped memory for tpu_custom_call.1']
    #allocation5 [shape = 'u8[8192]{0}', space=vmem, size = 0x2000, scoped, tag = 'input window, operand 1, single buffered']
    #allocation6 [shape = 's32[1]{0}', space=sflag, size = 0x4, scoped, tag = 'scoped memory for tpu_custom_call.1']
    #allocation7 [shape = 'u8[65536]{0}', space=vmem, size = 0x10000, scoped, tag = 'input window, operand 2']
    #allocation8 [shape = 'u8[98304]{0}', space=vmem, size = 0x18000, scoped, tag = 'output window, operand 0']
    %8 = vsyncpa [#allocation3], 0
    %9 = vsyncpa [#allocation6], 0
    %10 = vsyncpa [#allocation4], 0
    %s11 = scalar_lea.sflag [#allocation4], 1
    %12 = vsyncpa %s11, 0
    loop: start=0, step=1, limit=4
    $region2: #{tpu_custom_call.1} parent=1 // loop_pre_header
      _
    $region3: #{tpu_custom_call.1} parent=1 // loop_header
      %s14 = sphi 0, %s18
      %p15 = scmp.ge.s32.totalorder %s14, 4
      %s21 = sphi 0, %s40
      %s22 = sphi 0, %s36
      %s23 = sphi 0, %s32
      %s24 = sphi 0, %s21
      %s25 = sphi 0, %s22
      %s26 = sphi 0, %s23
      %s27 = sphi 0, %s24
      %s28 = sphi 0, %s25
      %s29 = sphi 0, %s26
      %s43 = sphi 0, %s45
      %s46 = sphi 0, %s43
      %s47 = sphi 0, %s46
      %s63 = sphi 0, %s47
      %s69 = sphi 0, %s71
      %s72 = sphi 0, %s69
      %s73 = sphi 0, %s72
      %s89 = sphi 0, %s73
      %s97 = sphi 0, %s99
      %s100 = sphi 0, %s97
      %s101 = sphi 0, %s100
      %s117 = sphi 0, %s101
      %s125 = sphi 0, %s127
      %s128 = sphi 0, %s125
      %s129 = sphi 0, %s128
      %s145 = sphi 0, %s129
    $region4: #{tpu_custom_call.1} parent=1 // loop_header_branch
      %17 = sbr.rel (%p15) target = $region8
    $region5: #{tpu_custom_call.1} parent=1 // loop_body
      %s19 = ssub.s32 %s14, 1
      %s20 = ssub.s32 %s14, 2
      %s30 = sadd.s32 1, %s23
      %p31 = scmp.ge.s32.totalorder %s30, 1
      %s32 = scalar_select %p31, 0, %s30
      %s33 = sadd.s32 1, %s22
      %s34 = scalar_select %p31, %s33, %s22
      %p35 = scmp.ge.s32.totalorder %s34, 1
      %s36 = scalar_select %p35, 0, %s34
      %s37 = sadd.s32 1, %s21
      %s38 = scalar_select %p35, %s37, %s21
      %p39 = scmp.ge.s32.totalorder %s38, 2
      %s40 = scalar_select %p39, 0, %s38
      %s41 = ssub.s32 %s22, %s36
      %p42 = scmp.eq.s32.totalorder %s41, 0
      %s44 = sadd.s32 %s43, 1
      %s45 = scalar_select %p42, %s43, %s44
      %p48 = pneg %p42
      %p49 = scmp.eq.s32.totalorder %s14, 1
      %p50 = por %p48, %p49
      %p51 = scmp.ne.s32.totalorder %s43, %s46
      %p52 = scmp.eq.s32.totalorder %s14, 0
      %p53 = por %p51, %p52
      %p54 = scmp.ne.s32.totalorder %s43, %s46
      %p55 = scmp.eq.s32.totalorder %s19, 1
      %p56 = por %p54, %p55
      %p57 = scmp.ne.s32.totalorder %s46, %s47
      %p58 = scmp.eq.s32.totalorder %s19, 0
      %p59 = por %p57, %p58
      %p60 = scmp.ne.s32.totalorder %s46, %s47
      %p61 = scmp.eq.s32.totalorder %s20, 1
      %p62 = por %p60, %p61
      %p64 = scmp.ne.s32.totalorder %s47, %s63
      %p65 = scmp.eq.s32.totalorder %s20, 0
      %p66 = por %p64, %p65
      %s67 = ssub.s32 %s23, %s32
      %p68 = scmp.eq.s32.totalorder %s67, 0
      %s70 = sadd.s32 %s69, 1
      %s71 = scalar_select %p68, %s69, %s70
      %p74 = pneg %p68
      %p75 = scmp.eq.s32.totalorder %s14, 1
      %p76 = por %p74, %p75
      %p77 = scmp.ne.s32.totalorder %s69, %s72
      %p78 = scmp.eq.s32.totalorder %s14, 0
      %p79 = por %p77, %p78
      %p80 = scmp.ne.s32.totalorder %s69, %s72
      %p81 = scmp.eq.s32.totalorder %s19, 1
      %p82 = por %p80, %p81
      %p83 = scmp.ne.s32.totalorder %s72, %s73
      %p84 = scmp.eq.s32.totalorder %s19, 0
      %p85 = por %p83, %p84
      %p86 = scmp.ne.s32.totalorder %s72, %s73
      %p87 = scmp.eq.s32.totalorder %s20, 1
      %p88 = por %p86, %p87
      %p90 = scmp.ne.s32.totalorder %s73, %s89
      %p91 = scmp.eq.s32.totalorder %s20, 0
      %p92 = por %p90, %p91
      %s93 = ssub.s32 %s21, %s40
      %s94 = ssub.s32 %s23, %s32
      %s95 = sor.u32 %s93, %s94
      %p96 = scmp.eq.s32.totalorder %s95, 0
      %s98 = sadd.s32 %s97, 1
      %s99 = scalar_select %p96, %s97, %s98
      %p102 = pneg %p96
      %p103 = scmp.eq.s32.totalorder %s14, 1
      %p104 = por %p102, %p103
      %p105 = scmp.ne.s32.totalorder %s97, %s100
      %p106 = scmp.eq.s32.totalorder %s14, 0
      %p107 = por %p105, %p106
      %p108 = scmp.ne.s32.totalorder %s97, %s100
      %p109 = scmp.eq.s32.totalorder %s19, 1
      %p110 = por %p108, %p109
      %p111 = scmp.ne.s32.totalorder %s100, %s101
      %p112 = scmp.eq.s32.totalorder %s19, 0
      %p113 = por %p111, %p112
      %p114 = scmp.ne.s32.totalorder %s100, %s101
      %p115 = scmp.eq.s32.totalorder %s20, 1
      %p116 = por %p114, %p115
      %p118 = scmp.ne.s32.totalorder %s101, %s117
      %p119 = scmp.eq.s32.totalorder %s20, 0
      %p120 = por %p118, %p119
      %s121 = ssub.s32 %s21, %s40
      %s122 = ssub.s32 %s22, %s36
      %s123 = sor.u32 %s121, %s122
      %p124 = scmp.eq.s32.totalorder %s123, 0
      %s126 = sadd.s32 %s125, 1
      %s127 = scalar_select %p124, %s125, %s126
      %p130 = pneg %p124
      %p131 = scmp.eq.s32.totalorder %s14, 1
      %p132 = por %p130, %p131
      %p133 = scmp.ne.s32.totalorder %s125, %s128
      %p134 = scmp.eq.s32.totalorder %s14, 0
      %p135 = por %p133, %p134
      %p136 = scmp.ne.s32.totalorder %s125, %s128
      %p137 = scmp.eq.s32.totalorder %s19, 1
      %p138 = por %p136, %p137
      %p139 = scmp.ne.s32.totalorder %s128, %s129
      %p140 = scmp.eq.s32.totalorder %s19, 0
      %p141 = por %p139, %p140
      %p142 = scmp.ne.s32.totalorder %s128, %s129
      %p143 = scmp.eq.s32.totalorder %s20, 1
      %p144 = por %p142, %p143
      %p146 = scmp.ne.s32.totalorder %s129, %s145
      %p147 = scmp.eq.s32.totalorder %s20, 0
      %p148 = por %p146, %p147
      %p149 = scmp.le.s32.totalorder 1, %s14
      %p150 = scmp.lt.s32.totalorder %s14, 3
      %p151 = pnand %p149, %p150
      %p152 = pneg %p151
      // Predicated region
      $region9: #{tpu_custom_call.1} parent=5 // pred_check
        _
      $region10: #{tpu_custom_call.1} parent=5 // pred_check_branch
        %154 = sbr.rel (%p151) target = $region12
      $region11: #{tpu_custom_call.1} parent=5 // pred_region
        %s155 = ssub.s32 %s14, 1
        // Predicated region
        $region13: #{tpu_custom_call.1} parent=11 // pred_check
          %p156 = pneg %p59
        $region14: #{tpu_custom_call.1} parent=11 // pred_check_branch
          %158 = sbr.rel (%p156) target = $region16
        $region15: #{tpu_custom_call.1} parent=11 // pred_region
          %s159 = smul.u32 6, %s25
          %s161 = ssub.s32 24576, 24576
          %162 = vsyncadd [#allocation3], %s161
          %s163 = smul.addr %s159, 128
          %s164 = scalar_lea.hbm %s0, %s163
          %s165 = sshll.u32 [#allocation2], 4
          %s166 = int_to_ptr.vmem [resolvable:$true] %s165
          %171 = dma.hbm_to_vmem [thread:$0]  %s164, 24576, %s166, [#allocation3], 768, 768, 48
        $region16: #{tpu_custom_call.1} parent=11 // pred_fallthru
          _
        // Predicated region
        $region17: #{tpu_custom_call.1} parent=11 // pred_check
          %p172 = pneg %p85
        $region18: #{tpu_custom_call.1} parent=11 // pred_check_branch
          %174 = sbr.rel (%p172) target = $region20
        $region19: #{tpu_custom_call.1} parent=11 // pred_region
          %s176 = ssub.s32 256, 256
          %177 = vsyncadd [#allocation6], %s176
          %s178 = smul.addr %s26, 2
          %s179 = smul.addr %s178, 128
          %s180 = scalar_lea.hbm %s1, %s179
          %s181 = sshll.u32 [#allocation5], 4
          %s182 = int_to_ptr.vmem [resolvable:$true] %s181
          %187 = dma.hbm_to_vmem [thread:$0]  %s180, 256, %s182, [#allocation6], 128, 128, 8
        $region20: #{tpu_custom_call.1} parent=11 // pred_fallthru
          _
      $region12: #{tpu_custom_call.1} parent=5 // pred_fallthru
        _
      %p188 = scmp.lt.s32.totalorder %s14, 2
      // Predicated region
      $region21: #{tpu_custom_call.1} parent=5 // pred_check
        %p189 = pneg %p188
      $region22: #{tpu_custom_call.1} parent=5 // pred_check_branch
        %191 = sbr.rel (%p189) target = $region24
      $region23: #{tpu_custom_call.1} parent=5 // pred_region
        // Predicated region
        $region25: #{tpu_custom_call.1} parent=23 // pred_check
          %p192 = pneg %p107
        $region26: #{tpu_custom_call.1} parent=23 // pred_check_branch
          %194 = sbr.rel (%p192) target = $region28
        $region27: #{tpu_custom_call.1} parent=23 // pred_region
          %s195 = sand.u32 %s14, 1
          %s196 = scalar_lea.sflag [#allocation3], %s195
          %s197 = sand.u32 %s97, 1
          %s198 = smul.addr %s197, 64
          %s199 = scalar_lea.vmem [#allocation7], %s198
          %s200 = smul.u32 2, %s21
          %s201 = smul.u32 2, %s23
          %s203 = ssub.s32 1024, 1024
          %204 = vsyncadd %s196, %s203
          %s205 = smul.addr %s201, 2
          %s206 = smul.addr %s200, 4
          %s207 = sadd.s32 %s205, %s206
          %s208 = smul.addr %s207, 128
          %s209 = scalar_lea.hbm %s2, %s208
          %s210 = sshll.u32 %s199, 4
          %s211 = int_to_ptr.vmem [resolvable:$true] %s210
          %216 = dma.hbm_to_vmem [thread:$0]  %s209, 1024, %s211, %s196, 256, 256, 16
        $region28: #{tpu_custom_call.1} parent=23 // pred_fallthru
          _
      $region24: #{tpu_custom_call.1} parent=5 // pred_fallthru
        _
      %p217 = scmp.le.s32.totalorder 1, %s14
      %p218 = scmp.lt.s32.totalorder %s14, 3
      %p219 = pnand %p217, %p218
      %p220 = pneg %p219
      // Predicated region
      $region29: #{tpu_custom_call.1} parent=5 // pred_check
        _
      $region30: #{tpu_custom_call.1} parent=5 // pred_check_branch
        %222 = sbr.rel (%p219) target = $region32
      $region31: #{tpu_custom_call.1} parent=5 // pred_region
        %s223 = ssub.s32 %s14, 1
        // Predicated region
        $region33: #{tpu_custom_call.1} parent=31 // pred_check
          %p224 = pneg %p59
        $region34: #{tpu_custom_call.1} parent=31 // pred_check_branch
          %226 = sbr.rel (%p224) target = $region36
        $region35: #{tpu_custom_call.1} parent=31 // pred_region
          %227 = dma.done [#allocation3], 24576
        $region36: #{tpu_custom_call.1} parent=31 // pred_fallthru
          _
        // Predicated region
        $region37: #{tpu_custom_call.1} parent=31 // pred_check
          %p228 = pneg %p85
        $region38: #{tpu_custom_call.1} parent=31 // pred_check_branch
          %230 = sbr.rel (%p228) target = $region40
        $region39: #{tpu_custom_call.1} parent=31 // pred_region
          %231 = dma.done [#allocation6], 256
        $region40: #{tpu_custom_call.1} parent=31 // pred_fallthru
          _
        %s232 = sand.u32 %s19, 1
        %s233 = scalar_lea.sflag [#allocation3], %s232
        %s234 = sand.u32 %s100, 1
        %s235 = smul.addr %s234, 64
        %s236 = scalar_lea.vmem [#allocation7], %s235
        // Predicated region
        $region41: #{tpu_custom_call.1} parent=31 // pred_check
          %p237 = pneg %p113
        $region42: #{tpu_custom_call.1} parent=31 // pred_check_branch
          %239 = sbr.rel (%p237) target = $region44
        $region43: #{tpu_custom_call.1} parent=31 // pred_region
          %240 = dma.done %s233, 1024
        $region44: #{tpu_custom_call.1} parent=31 // pred_fallthru
          _
        %p241 = pneg %p59
        %p242 = pneg %p56
        %p243 = pneg %p85
        %p244 = pneg %p82
        %s245 = sand.u32 %s19, 1
        %s246 = scalar_lea.sflag [#allocation3], %s245
        %s247 = sand.u32 %s100, 1
        %s248 = smul.addr %s247, 64
        %s249 = scalar_lea.vmem [#allocation7], %s248
        %p250 = pneg %p113
        %p251 = pneg %p110
        %p252 = pneg %p141
        %p253 = pneg %p138
        %s254 = sand.u32 %s128, 1
        %s255 = scalar_lea.sflag [#allocation4], %s254
        %s256 = sand.u32 %s128, 1
        %s257 = smul.addr %s256, 96
        %s258 = scalar_lea.vmem [#allocation8], %s257
        %s259 = smul.u32 6, %s25
        %s260 = smul.u32 2, %s24
        %s261 = smul.u32 2, %s26
        %s262 = smul.u32 2, %s24
        %s263 = smul.u32 6, %s25
        %v264 = vld [vmem:[%s236] sm:$0xff]
        %v265 = vld [vmem:[%s236 + $0x8] sm:$0xff]
        %v266 = vld [vmem:[%s236 + $0x10] sm:$0xff]
        %v267 = vld [vmem:[%s236 + $0x18] sm:$0xff]
        %v268 = vld [vmem:[%s236 + $0x20] sm:$0xff]
        %v269 = vld [vmem:[%s236 + $0x28] sm:$0xff]
        %v270 = vld [vmem:[%s236 + $0x30] sm:$0xff]
        %v271 = vld [vmem:[%s236 + $0x38] sm:$0xff]
        %v272 = vld [vmem:[#allocation2] sm:$0xff]
        %v273 = vld [vmem:[#allocation2 + $0x8] sm:$0xff]
        %v274 = vld [vmem:[#allocation2 + $0x10] sm:$0xff]
        %v275 = vld [vmem:[#allocation2 + $0x18] sm:$0xff]
        %v276 = vld [vmem:[#allocation2 + $0x20] sm:$0xff]
        %v277 = vld [vmem:[#allocation2 + $0x28] sm:$0xff]
        %v278 = vld [vmem:[#allocation2 + $0x30] sm:$0xff]
        %v279 = vld [vmem:[#allocation2 + $0x38] sm:$0xff]
        %v280 = vld [vmem:[#allocation2 + $0x40] sm:$0xff]
        %v281 = vld [vmem:[#allocation2 + $0x48] sm:$0xff]
        %v282 = vld [vmem:[#allocation2 + $0x50] sm:$0xff]
        %v283 = vld [vmem:[#allocation2 + $0x58] sm:$0xff]
        %v284 = vld [vmem:[#allocation2 + $0x60] sm:$0xff]
        %v285 = vld [vmem:[#allocation2 + $0x68] sm:$0xff]
        %v286 = vld [vmem:[#allocation2 + $0x70] sm:$0xff]
        %v287 = vld [vmem:[#allocation2 + $0x78] sm:$0xff]
        %v288 = vld [vmem:[#allocation2 + $0x80] sm:$0xff]
        %v289 = vld [vmem:[#allocation2 + $0x88] sm:$0xff]
        %v290 = vld [vmem:[#allocation2 + $0x90] sm:$0xff]
        %v291 = vld [vmem:[#allocation2 + $0x98] sm:$0xff]
        %v292 = vld [vmem:[#allocation2 + $0xa0] sm:$0xff]
        %v293 = vld [vmem:[#allocation2 + $0xa8] sm:$0xff]
        %v294 = vld [vmem:[#allocation2 + $0xb0] sm:$0xff]
        %v295 = vld [vmem:[#allocation2 + $0xb8] sm:$0xff]
        %v296 = vld [vmem:[#allocation2 + $0xc0] sm:$0xff]
        %v297 = vld [vmem:[#allocation2 + $0xc8] sm:$0xff]
        %v298 = vld [vmem:[#allocation2 + $0xd0] sm:$0xff]
        %v299 = vld [vmem:[#allocation2 + $0xd8] sm:$0xff]
        %v300 = vld [vmem:[#allocation2 + $0xe0] sm:$0xff]
        %v301 = vld [vmem:[#allocation2 + $0xe8] sm:$0xff]
        %v302 = vld [vmem:[#allocation2 + $0xf0] sm:$0xff]
        %v303 = vld [vmem:[#allocation2 + $0xf8] sm:$0xff]
        %v304 = vld [vmem:[#allocation2 + $0x100] sm:$0xff]
        %v305 = vld [vmem:[#allocation2 + $0x108] sm:$0xff]
        %v306 = vld [vmem:[#allocation2 + $0x110] sm:$0xff]
        %v307 = vld [vmem:[#allocation2 + $0x118] sm:$0xff]
        %v308 = vld [vmem:[#allocation2 + $0x120] sm:$0xff]
        %v309 = vld [vmem:[#allocation2 + $0x128] sm:$0xff]
        %v310 = vld [vmem:[#allocation2 + $0x130] sm:$0xff]
        %v311 = vld [vmem:[#allocation2 + $0x138] sm:$0xff]
        %v312 = vld [vmem:[#allocation2 + $0x140] sm:$0xff]
        %v313 = vld [vmem:[#allocation2 + $0x148] sm:$0xff]
        %v314 = vld [vmem:[#allocation2 + $0x150] sm:$0xff]
        %v315 = vld [vmem:[#allocation2 + $0x158] sm:$0xff]
        %v316 = vld [vmem:[#allocation2 + $0x160] sm:$0xff]
        %v317 = vld [vmem:[#allocation2 + $0x168] sm:$0xff]
        %v318 = vld [vmem:[#allocation2 + $0x170] sm:$0xff]
        %v319 = vld [vmem:[#allocation2 + $0x178] sm:$0xff]
        %v320 = vld [vmem:[#allocation2 + $0x180] sm:$0xff]
        %v321 = vld [vmem:[#allocation2 + $0x188] sm:$0xff]
        %v322 = vld [vmem:[#allocation2 + $0x190] sm:$0xff]
        %v323 = vld [vmem:[#allocation2 + $0x198] sm:$0xff]
        %v324 = vld [vmem:[#allocation2 + $0x1a0] sm:$0xff]
        %v325 = vld [vmem:[#allocation2 + $0x1a8] sm:$0xff]
        %v326 = vld [vmem:[#allocation2 + $0x1b0] sm:$0xff]
        %v327 = vld [vmem:[#allocation2 + $0x1b8] sm:$0xff]
        %v328 = vld [vmem:[#allocation2 + $0x1c0] sm:$0xff]
        %v329 = vld [vmem:[#allocation2 + $0x1c8] sm:$0xff]
        %v330 = vld [vmem:[#allocation2 + $0x1d0] sm:$0xff]
        %v331 = vld [vmem:[#allocation2 + $0x1d8] sm:$0xff]
        %v332 = vld [vmem:[#allocation2 + $0x1e0] sm:$0xff]
        %v333 = vld [vmem:[#allocation2 + $0x1e8] sm:$0xff]
        %v334 = vld [vmem:[#allocation2 + $0x1f0] sm:$0xff]
        %v335 = vld [vmem:[#allocation2 + $0x1f8] sm:$0xff]
        %v336 = vld [vmem:[#allocation2 + $0x200] sm:$0xff]
        %v337 = vld [vmem:[#allocation2 + $0x208] sm:$0xff]
        %v338 = vld [vmem:[#allocation2 + $0x210] sm:$0xff]
        %v339 = vld [vmem:[#allocation2 + $0x218] sm:$0xff]
        %v340 = vld [vmem:[#allocation2 + $0x220] sm:$0xff]
        %v341 = vld [vmem:[#allocation2 + $0x228] sm:$0xff]
        %v342 = vld [vmem:[#allocation2 + $0x230] sm:$0xff]
        %v343 = vld [vmem:[#allocation2 + $0x238] sm:$0xff]
        %v344 = vld [vmem:[#allocation2 + $0x240] sm:$0xff]
        %v345 = vld [vmem:[#allocation2 + $0x248] sm:$0xff]
        %v346 = vld [vmem:[#allocation2 + $0x250] sm:$0xff]
        %v347 = vld [vmem:[#allocation2 + $0x258] sm:$0xff]
        %v348 = vld [vmem:[#allocation2 + $0x260] sm:$0xff]
        %v349 = vld [vmem:[#allocation2 + $0x268] sm:$0xff]
        %v350 = vld [vmem:[#allocation2 + $0x270] sm:$0xff]
        %v351 = vld [vmem:[#allocation2 + $0x278] sm:$0xff]
        %v352 = vld [vmem:[#allocation2 + $0x280] sm:$0xff]
        %v353 = vld [vmem:[#allocation2 + $0x288] sm:$0xff]
        %v354 = vld [vmem:[#allocation2 + $0x290] sm:$0xff]
        %v355 = vld [vmem:[#allocation2 + $0x298] sm:$0xff]
        %v356 = vld [vmem:[#allocation2 + $0x2a0] sm:$0xff]
        %v357 = vld [vmem:[#allocation2 + $0x2a8] sm:$0xff]
        %v358 = vld [vmem:[#allocation2 + $0x2b0] sm:$0xff]
        %v359 = vld [vmem:[#allocation2 + $0x2b8] sm:$0xff]
        %v360 = vld [vmem:[#allocation2 + $0x2c0] sm:$0xff]
        %v361 = vld [vmem:[#allocation2 + $0x2c8] sm:$0xff]
        %v362 = vld [vmem:[#allocation2 + $0x2d0] sm:$0xff]
        %v363 = vld [vmem:[#allocation2 + $0x2d8] sm:$0xff]
        %v364 = vld [vmem:[#allocation2 + $0x2e0] sm:$0xff]
        %v365 = vld [vmem:[#allocation2 + $0x2e8] sm:$0xff]
        %v366 = vld [vmem:[#allocation2 + $0x2f0] sm:$0xff]
        %v367 = vld [vmem:[#allocation2 + $0x2f8] sm:$0xff]
        %v368 = vld [vmem:[#allocation2 + $0x300] sm:$0xff]
        %v369 = vld [vmem:[#allocation2 + $0x308] sm:$0xff]
        %v370 = vld [vmem:[#allocation2 + $0x310] sm:$0xff]
        %v371 = vld [vmem:[#allocation2 + $0x318] sm:$0xff]
        %v372 = vld [vmem:[#allocation2 + $0x320] sm:$0xff]
        %v373 = vld [vmem:[#allocation2 + $0x328] sm:$0xff]
        %v374 = vld [vmem:[#allocation2 + $0x330] sm:$0xff]
        %v375 = vld [vmem:[#allocation2 + $0x338] sm:$0xff]
        %v376 = vld [vmem:[#allocation2 + $0x340] sm:$0xff]
        %v377 = vld [vmem:[#allocation2 + $0x348] sm:$0xff]
        %v378 = vld [vmem:[#allocation2 + $0x350] sm:$0xff]
        %v379 = vld [vmem:[#allocation2 + $0x358] sm:$0xff]
        %v380 = vld [vmem:[#allocation2 + $0x360] sm:$0xff]
        %v381 = vld [vmem:[#allocation2 + $0x368] sm:$0xff]
        %v382 = vld [vmem:[#allocation2 + $0x370] sm:$0xff]
        %v383 = vld [vmem:[#allocation2 + $0x378] sm:$0xff]
        %v384 = vld [vmem:[#allocation2 + $0x380] sm:$0xff]
        %v385 = vld [vmem:[#allocation2 + $0x388] sm:$0xff]
        %v386 = vld [vmem:[#allocation2 + $0x390] sm:$0xff]
        %v387 = vld [vmem:[#allocation2 + $0x398] sm:$0xff]
        %v388 = vld [vmem:[#allocation2 + $0x3a0] sm:$0xff]
        %v389 = vld [vmem:[#allocation2 + $0x3a8] sm:$0xff]
        %v390 = vld [vmem:[#allocation2 + $0x3b0] sm:$0xff]
        %v391 = vld [vmem:[#allocation2 + $0x3b8] sm:$0xff]
        %v392 = vld [vmem:[#allocation2 + $0x3c0] sm:$0xff]
        %v393 = vld [vmem:[#allocation2 + $0x3c8] sm:$0xff]
        %v394 = vld [vmem:[#allocation2 + $0x3d0] sm:$0xff]
        %v395 = vld [vmem:[#allocation2 + $0x3d8] sm:$0xff]
        %v396 = vld [vmem:[#allocation2 + $0x3e0] sm:$0xff]
        %v397 = vld [vmem:[#allocation2 + $0x3e8] sm:$0xff]
        %v398 = vld [vmem:[#allocation2 + $0x3f0] sm:$0xff]
        %v399 = vld [vmem:[#allocation2 + $0x3f8] sm:$0xff]
        %v400 = vld [vmem:[#allocation2 + $0x400] sm:$0xff]
        %v401 = vld [vmem:[#allocation2 + $0x408] sm:$0xff]
        %v402 = vld [vmem:[#allocation2 + $0x410] sm:$0xff]
        %v403 = vld [vmem:[#allocation2 + $0x418] sm:$0xff]
        %v404 = vld [vmem:[#allocation2 + $0x420] sm:$0xff]
        %v405 = vld [vmem:[#allocation2 + $0x428] sm:$0xff]
        %v406 = vld [vmem:[#allocation2 + $0x430] sm:$0xff]
        %v407 = vld [vmem:[#allocation2 + $0x438] sm:$0xff]
        %v408 = vld [vmem:[#allocation2 + $0x440] sm:$0xff]
        %v409 = vld [vmem:[#allocation2 + $0x448] sm:$0xff]
        %v410 = vld [vmem:[#allocation2 + $0x450] sm:$0xff]
        %v411 = vld [vmem:[#allocation2 + $0x458] sm:$0xff]
        %v412 = vld [vmem:[#allocation2 + $0x460] sm:$0xff]
        %v413 = vld [vmem:[#allocation2 + $0x468] sm:$0xff]
        %v414 = vld [vmem:[#allocation2 + $0x470] sm:$0xff]
        %v415 = vld [vmem:[#allocation2 + $0x478] sm:$0xff]
        %v416 = vld [vmem:[#allocation2 + $0x480] sm:$0xff]
        %v417 = vld [vmem:[#allocation2 + $0x488] sm:$0xff]
        %v418 = vld [vmem:[#allocation2 + $0x490] sm:$0xff]
        %v419 = vld [vmem:[#allocation2 + $0x498] sm:$0xff]
        %v420 = vld [vmem:[#allocation2 + $0x4a0] sm:$0xff]
        %v421 = vld [vmem:[#allocation2 + $0x4a8] sm:$0xff]
        %v422 = vld [vmem:[#allocation2 + $0x4b0] sm:$0xff]
        %v423 = vld [vmem:[#allocation2 + $0x4b8] sm:$0xff]
        %v424 = vld [vmem:[#allocation2 + $0x4c0] sm:$0xff]
        %v425 = vld [vmem:[#allocation2 + $0x4c8] sm:$0xff]
        %v426 = vld [vmem:[#allocation2 + $0x4d0] sm:$0xff]
        %v427 = vld [vmem:[#allocation2 + $0x4d8] sm:$0xff]
        %v428 = vld [vmem:[#allocation2 + $0x4e0] sm:$0xff]
        %v429 = vld [vmem:[#allocation2 + $0x4e8] sm:$0xff]
        %v430 = vld [vmem:[#allocation2 + $0x4f0] sm:$0xff]
        %v431 = vld [vmem:[#allocation2 + $0x4f8] sm:$0xff]
        %v432 = vld [vmem:[#allocation2 + $0x500] sm:$0xff]
        %v433 = vld [vmem:[#allocation2 + $0x508] sm:$0xff]
        %v434 = vld [vmem:[#allocation2 + $0x510] sm:$0xff]
        %v435 = vld [vmem:[#allocation2 + $0x518] sm:$0xff]
        %v436 = vld [vmem:[#allocation2 + $0x520] sm:$0xff]
        %v437 = vld [vmem:[#allocation2 + $0x528] sm:$0xff]
        %v438 = vld [vmem:[#allocation2 + $0x530] sm:$0xff]
        %v439 = vld [vmem:[#allocation2 + $0x538] sm:$0xff]
        %v440 = vld [vmem:[#allocation2 + $0x540] sm:$0xff]
        %v441 = vld [vmem:[#allocation2 + $0x548] sm:$0xff]
        %v442 = vld [vmem:[#allocation2 + $0x550] sm:$0xff]
        %v443 = vld [vmem:[#allocation2 + $0x558] sm:$0xff]
        %v444 = vld [vmem:[#allocation2 + $0x560] sm:$0xff]
        %v445 = vld [vmem:[#allocation2 + $0x568] sm:$0xff]
        %v446 = vld [vmem:[#allocation2 + $0x570] sm:$0xff]
        %v447 = vld [vmem:[#allocation2 + $0x578] sm:$0xff]
        %v448 = vld [vmem:[#allocation2 + $0x580] sm:$0xff]
        %v449 = vld [vmem:[#allocation2 + $0x588] sm:$0xff]
        %v450 = vld [vmem:[#allocation2 + $0x590] sm:$0xff]
        %v451 = vld [vmem:[#allocation2 + $0x598] sm:$0xff]
        %v452 = vld [vmem:[#allocation2 + $0x5a0] sm:$0xff]
        %v453 = vld [vmem:[#allocation2 + $0x5a8] sm:$0xff]
        %v454 = vld [vmem:[#allocation2 + $0x5b0] sm:$0xff]
        %v455 = vld [vmem:[#allocation2 + $0x5b8] sm:$0xff]
        %v456 = vld [vmem:[#allocation2 + $0x5c0] sm:$0xff]
        %v457 = vld [vmem:[#allocation2 + $0x5c8] sm:$0xff]
        %v458 = vld [vmem:[#allocation2 + $0x5d0] sm:$0xff]
        %v459 = vld [vmem:[#allocation2 + $0x5d8] sm:$0xff]
        %v460 = vld [vmem:[#allocation2 + $0x5e0] sm:$0xff]
        %v461 = vld [vmem:[#allocation2 + $0x5e8] sm:$0xff]
        %v462 = vld [vmem:[#allocation2 + $0x5f0] sm:$0xff]
        %v463 = vld [vmem:[#allocation2 + $0x5f8] sm:$0xff]
        %464 = vmatprep.subr.mxu0 %v273
        %465 = vmatpush1.msra.mxu0 %v272
        %466 = vmatprep.subr.mxu0 %v279
        %467 = vmatpush1.msra.mxu0 %v278
        %468 = vmatprep.subr.mxu0 %v285
        %469 = vmatpush1.msra.mxu0 %v284
        %470 = vmatprep.subr.mxu0 %v291
        %471 = vmatpush1.msra.mxu0 %v290
        %472 = vmatprep.subr.mxu0 %v297
        %473 = vmatpush1.msra.mxu0 %v296
        %474 = vmatprep.subr.mxu0 %v303
        %475 = vmatpush1.msra.mxu0 %v302
        %476 = vmatprep.subr.mxu0 %v309
        %477 = vmatpush1.msra.mxu0 %v308
        %478 = vmatprep.subr.mxu0 %v315
        %479 = vmatpush1.msra.mxu0 %v314
        %480 = vmatprep.subr.mxu0 %v321
        %481 = vmatpush1.msra.mxu0 %v320
        %482 = vmatprep.subr.mxu0 %v327
        %483 = vmatpush1.msra.mxu0 %v326
        %484 = vmatprep.subr.mxu0 %v333
        %485 = vmatpush1.msra.mxu0 %v332
        %486 = vmatprep.subr.mxu0 %v339
        %487 = vmatpush1.msra.mxu0 %v338
        %488 = vmatprep.subr.mxu0 %v345
        %489 = vmatpush1.msra.mxu0 %v344
        %490 = vmatprep.subr.mxu0 %v351
        %491 = vmatpush1.msra.mxu0 %v350
        %492 = vmatprep.subr.mxu0 %v357
        %493 = vmatpush1.msra.mxu0 %v356
        %494 = vmatprep.subr.mxu0 %v363
        %495 = vmatpush1.msra.mxu0 %v362
        %496 = vmatprep.subr.mxu0 %v369
        %497 = vmatpush1.msra.mxu0 %v368
        %498 = vmatprep.subr.mxu0 %v375
        %499 = vmatpush1.msra.mxu0 %v374
        %500 = vmatprep.subr.mxu0 %v381
        %501 = vmatpush1.msra.mxu0 %v380
        %502 = vmatprep.subr.mxu0 %v387
        %503 = vmatpush1.msra.mxu0 %v386
        %504 = vmatprep.subr.mxu0 %v393
        %505 = vmatpush1.msra.mxu0 %v392
        %506 = vmatprep.subr.mxu0 %v399
        %507 = vmatpush1.msra.mxu0 %v398
        %508 = vmatprep.subr.mxu0 %v405
        %509 = vmatpush1.msra.mxu0 %v404
        %510 = vmatprep.subr.mxu0 %v411
        %511 = vmatpush1.msra.mxu0 %v410
        %512 = vmatprep.subr.mxu0 %v417
        %513 = vmatpush1.msra.mxu0 %v416
        %514 = vmatprep.subr.mxu0 %v423
        %515 = vmatpush1.msra.mxu0 %v422
        %516 = vmatprep.subr.mxu0 %v429
        %517 = vmatpush1.msra.mxu0 %v428
        %518 = vmatprep.subr.mxu0 %v435
        %519 = vmatpush1.msra.mxu0 %v434
        %520 = vmatprep.subr.mxu0 %v441
        %521 = vmatpush1.msra.mxu0 %v440
        %522 = vmatprep.subr.mxu0 %v447
        %523 = vmatpush1.msra.mxu0 %v446
        %524 = vmatprep.subr.mxu0 %v453
        %525 = vmatpush1.msra.mxu0 %v452
        %526 = vmatprep.subr.mxu0 %v459
        %527 = vmatpush1.msra.mxu0 %v458
        %528 = vmatprep.mubr.f32.mxu0 %v265
        %529 = vmatmul.mubr.f32.gmra.mrb[0].mxu0 %v264
        %v530 = vpop.f32.mrb[0].mxu0
        %v531 = vadd.f32 0.0, %v530
        %v532 = vpop.f32.mrb[0].mxu0
        %v533 = vadd.f32 0.0, %v532
        %534 = vmatprep.mubr.f32.mxu0 %v267
        %535 = vmatmul.mubr.f32.gmra.mrb[0].mxu0 %v266
        %v536 = vpop.f32.mrb[0].mxu0
        %v537 = vadd.f32 0.0, %v536
        %v538 = vpop.f32.mrb[0].mxu0
        %v539 = vadd.f32 0.0, %v538
        %540 = vmatprep.mubr.f32.mxu0 %v269
        %541 = vmatmul.mubr.f32.gmra.mrb[0].mxu0 %v268
        %v542 = vpop.f32.mrb[0].mxu0
        %v543 = vadd.f32 0.0, %v542
        %v544 = vpop.f32.mrb[0].mxu0
        %v545 = vadd.f32 0.0, %v544
        %546 = vmatprep.mubr.f32.mxu0 %v271
        %547 = vmatmul.mubr.f32.gmra.mrb[0].mxu0 %v270
        %v548 = vpop.f32.mrb[0].mxu0
        %v549 = vadd.f32 0.0, %v548
        %v550 = vpop.f32.mrb[0].mxu0
        %v551 = vadd.f32 0.0, %v550
        %552 = vdwg.mxu0
        %553 = vmatprep.subr.mxu0 %v275
        %554 = vmatpush1.msra.mxu0 %v274
        %555 = vmatprep.subr.mxu0 %v281
        %556 = vmatpush1.msra.mxu0 %v280
        %557 = vmatprep.subr.mxu0 %v287
        %558 = vmatpush1.msra.mxu0 %v286
        %559 = vmatprep.subr.mxu0 %v293
        %560 = vmatpush1.msra.mxu0 %v292
        %561 = vmatprep.subr.mxu0 %v299
        %562 = vmatpush1.msra.mxu0 %v298
        %563 = vmatprep.subr.mxu0 %v305
        %564 = vmatpush1.msra.mxu0 %v304
        %565 = vmatprep.subr.mxu0 %v311
        %566 = vmatpush1.msra.mxu0 %v310
        %567 = vmatprep.subr.mxu0 %v317
        %568 = vmatpush1.msra.mxu0 %v316
        %569 = vmatprep.subr.mxu0 %v323
        %570 = vmatpush1.msra.mxu0 %v322
        %571 = vmatprep.subr.mxu0 %v329
        %572 = vmatpush1.msra.mxu0 %v328
        %573 = vmatprep.subr.mxu0 %v335
        %574 = vmatpush1.msra.mxu0 %v334
        %575 = vmatprep.subr.mxu0 %v341
        %576 = vmatpush1.msra.mxu0 %v340
        %577 = vmatprep.subr.mxu0 %v347
        %578 = vmatpush1.msra.mxu0 %v346
        %579 = vmatprep.subr.mxu0 %v353
        %580 = vmatpush1.msra.mxu0 %v352
        %581 = vmatprep.subr.mxu0 %v359
        %582 = vmatpush1.msra.mxu0 %v358
        %583 = vmatprep.subr.mxu0 %v365
        %584 = vmatpush1.msra.mxu0 %v364
        %585 = vmatprep.subr.mxu0 %v371
        %586 = vmatpush1.msra.mxu0 %v370
        %587 = vmatprep.subr.mxu0 %v377
        %588 = vmatpush1.msra.mxu0 %v376
        %589 = vmatprep.subr.mxu0 %v383
        %590 = vmatpush1.msra.mxu0 %v382
        %591 = vmatprep.subr.mxu0 %v389
        %592 = vmatpush1.msra.mxu0 %v388
        %593 = vmatprep.subr.mxu0 %v395
        %594 = vmatpush1.msra.mxu0 %v394
        %595 = vmatprep.subr.mxu0 %v401
        %596 = vmatpush1.msra.mxu0 %v400
        %597 = vmatprep.subr.mxu0 %v407
        %598 = vmatpush1.msra.mxu0 %v406
        %599 = vmatprep.subr.mxu0 %v413
        %600 = vmatpush1.msra.mxu0 %v412
        %601 = vmatprep.subr.mxu0 %v419
        %602 = vmatpush1.msra.mxu0 %v418
        %603 = vmatprep.subr.mxu0 %v425
        %604 = vmatpush1.msra.mxu0 %v424
        %605 = vmatprep.subr.mxu0 %v431
        %606 = vmatpush1.msra.mxu0 %v430
        %607 = vmatprep.subr.mxu0 %v437
        %608 = vmatpush1.msra.mxu0 %v436
        %609 = vmatprep.subr.mxu0 %v443
        %610 = vmatpush1.msra.mxu0 %v442
        %611 = vmatprep.subr.mxu0 %v449
        %612 = vmatpush1.msra.mxu0 %v448
        %613 = vmatprep.subr.mxu0 %v455
        %614 = vmatpush1.msra.mxu0 %v454
        %615 = vmatprep.subr.mxu0 %v461
        %616 = vmatpush1.msra.mxu0 %v460
        %617 = vmatprep.mubr.f32.mxu0 %v265
        %618 = vmatmul.mubr.f32.gmra.mrb[0].mxu0 %v264
        %v619 = vpop.f32.mrb[0].mxu0
        %v620 = vadd.f32 0.0, %v619
        %v621 = vpop.f32.mrb[0].mxu0
        %v622 = vadd.f32 0.0, %v621
        %623 = vmatprep.mubr.f32.mxu0 %v267
        %624 = vmatmul.mubr.f32.gmra.mrb[0].mxu0 %v266
        %v625 = vpop.f32.mrb[0].mxu0
        %v626 = vadd.f32 0.0, %v625
        %v627 = vpop.f32.mrb[0].mxu0
        %v628 = vadd.f32 0.0, %v627
        %629 = vmatprep.mubr.f32.mxu0 %v269
        %630 = vmatmul.mubr.f32.gmra.mrb[0].mxu0 %v268
        %v631 = vpop.f32.mrb[0].mxu0
        %v632 = vadd.f32 0.0, %v631
        %v633 = vpop.f32.mrb[0].mxu0
        %v634 = vadd.f32 0.0, %v633
        %635 = vmatprep.mubr.f32.mxu0 %v271
        %636 = vmatmul.mubr.f32.gmra.mrb[0].mxu0 %v270
        %v637 = vpop.f32.mrb[0].mxu0
        %v638 = vadd.f32 0.0, %v637
        %v639 = vpop.f32.mrb[0].mxu0
        %v640 = vadd.f32 0.0, %v639
        %641 = vdwg.mxu0
        %642 = vmatprep.subr.mxu0 %v277
        %643 = vmatpush1.msra.mxu0 %v276
        %644 = vmatprep.subr.mxu0 %v283
        %645 = vmatpush1.msra.mxu0 %v282
        %646 = vmatprep.subr.mxu0 %v289
        %647 = vmatpush1.msra.mxu0 %v288
        %648 = vmatprep.subr.mxu0 %v295
        %649 = vmatpush1.msra.mxu0 %v294
        %650 = vmatprep.subr.mxu0 %v301
        %651 = vmatpush1.msra.mxu0 %v300
        %652 = vmatprep.subr.mxu0 %v307
        %653 = vmatpush1.msra.mxu0 %v306
        %654 = vmatprep.subr.mxu0 %v313
        %655 = vmatpush1.msra.mxu0 %v312
        %656 = vmatprep.subr.mxu0 %v319
        %657 = vmatpush1.msra.mxu0 %v318
        %658 = vmatprep.subr.mxu0 %v325
        %659 = vmatpush1.msra.mxu0 %v324
        %660 = vmatprep.subr.mxu0 %v331
        %661 = vmatpush1.msra.mxu0 %v330
        %662 = vmatprep.subr.mxu0 %v337
        %663 = vmatpush1.msra.mxu0 %v336
        %664 = vmatprep.subr.mxu0 %v343
        %665 = vmatpush1.msra.mxu0 %v342
        %666 = vmatprep.subr.mxu0 %v349
        %667 = vmatpush1.msra.mxu0 %v348
        %668 = vmatprep.subr.mxu0 %v355
        %669 = vmatpush1.msra.mxu0 %v354
        %670 = vmatprep.subr.mxu0 %v361
        %671 = vmatpush1.msra.mxu0 %v360
        %672 = vmatprep.subr.mxu0 %v367
        %673 = vmatpush1.msra.mxu0 %v366
        %674 = vmatprep.subr.mxu0 %v373
        %675 = vmatpush1.msra.mxu0 %v372
        %676 = vmatprep.subr.mxu0 %v379
        %677 = vmatpush1.msra.mxu0 %v378
        %678 = vmatprep.subr.mxu0 %v385
        %679 = vmatpush1.msra.mxu0 %v384
        %680 = vmatprep.subr.mxu0 %v391
        %681 = vmatpush1.msra.mxu0 %v390
        %682 = vmatprep.subr.mxu0 %v397
        %683 = vmatpush1.msra.mxu0 %v396
        %684 = vmatprep.subr.mxu0 %v403
        %685 = vmatpush1.msra.mxu0 %v402
        %686 = vmatprep.subr.mxu0 %v409
        %687 = vmatpush1.msra.mxu0 %v408
        %688 = vmatprep.subr.mxu0 %v415
        %689 = vmatpush1.msra.mxu0 %v414
        %690 = vmatprep.subr.mxu0 %v421
        %691 = vmatpush1.msra.mxu0 %v420
        %692 = vmatprep.subr.mxu0 %v427
        %693 = vmatpush1.msra.mxu0 %v426
        %694 = vmatprep.subr.mxu0 %v433
        %695 = vmatpush1.msra.mxu0 %v432
        %696 = vmatprep.subr.mxu0 %v439
        %697 = vmatpush1.msra.mxu0 %v438
        %698 = vmatprep.subr.mxu0 %v445
        %699 = vmatpush1.msra.mxu0 %v444
        %700 = vmatprep.subr.mxu0 %v451
        %701 = vmatpush1.msra.mxu0 %v450
        %702 = vmatprep.subr.mxu0 %v457
        %703 = vmatpush1.msra.mxu0 %v456
        %704 = vmatprep.subr.mxu0 %v463
        %705 = vmatpush1.msra.mxu0 %v462
        %706 = vmatprep.mubr.f32.mxu0 %v265
        %707 = vmatmul.mubr.f32.gmra.mrb[0].mxu0 %v264
        %v708 = vpop.f32.mrb[0].mxu0
        %v709 = vadd.f32 0.0, %v708
        %v710 = vpop.f32.mrb[0].mxu0
        %v711 = vadd.f32 0.0, %v710
        %712 = vmatprep.mubr.f32.mxu0 %v267
        %713 = vmatmul.mubr.f32.gmra.mrb[0].mxu0 %v266
        %v714 = vpop.f32.mrb[0].mxu0
        %v715 = vadd.f32 0.0, %v714
        %v716 = vpop.f32.mrb[0].mxu0
        %v717 = vadd.f32 0.0, %v716
        %718 = vmatprep.mubr.f32.mxu0 %v269
        %719 = vmatmul.mubr.f32.gmra.mrb[0].mxu0 %v268
        %v720 = vpop.f32.mrb[0].mxu0
        %v721 = vadd.f32 0.0, %v720
        %v722 = vpop.f32.mrb[0].mxu0
        %v723 = vadd.f32 0.0, %v722
        %724 = vmatprep.mubr.f32.mxu0 %v271
        %725 = vmatmul.mubr.f32.gmra.mrb[0].mxu0 %v270
        %v726 = vpop.f32.mrb[0].mxu0
        %v727 = vadd.f32 0.0, %v726
        %v728 = vpop.f32.mrb[0].mxu0
        %v729 = vadd.f32 0.0, %v728
        %730 = vdwg.mxu0
        %v731 = vld [vmem:[#allocation5] sm:$0xff]
        %v732 = vld [vmem:[#allocation5 + $0x8] sm:$0xff]
        %vm733 = vcmask 261120
        %v735 = vsel %vm733, %v731, 0
        %v738 = vsel %vm733, %v732, 0
        %740 = vmatprep.subr.mxu0 %v533
        %741 = vmatpush1.msra.mxu0 %v531
        %742 = vmatprep.subr.mxu0 %v539
        %743 = vmatpush1.msra.mxu0 %v537
        %744 = vmatprep.subr.mxu0 %v545
        %745 = vmatpush1.msra.mxu0 %v543
        %746 = vmatprep.subr.mxu0 %v551
        %747 = vmatpush1.msra.mxu0 %v549
        %748 = vmatprep.subr.mxu0 0.0
        %749 = vmatpush1.msra.mxu0 0.0
        %750 = vmatprep.subr.mxu0 0.0
        %751 = vmatpush1.msra.mxu0 0.0
        %752 = vmatprep.subr.mxu0 0.0
        %753 = vmatpush1.msra.mxu0 0.0
        %754 = vmatprep.subr.mxu0 0.0
        %755 = vmatpush1.msra.mxu0 0.0
        %756 = vmatprep.subr.mxu0 0.0
        %757 = vmatpush1.msra.mxu0 0.0
        %758 = vmatprep.subr.mxu0 0.0
        %759 = vmatpush1.msra.mxu0 0.0
        %760 = vmatprep.subr.mxu0 0.0
        %761 = vmatpush1.msra.mxu0 0.0
        %762 = vmatprep.subr.mxu0 0.0
        %763 = vmatpush1.msra.mxu0 0.0
        %764 = vmatprep.subr.mxu0 0.0
        %765 = vmatpush1.msra.mxu0 0.0
        %766 = vmatprep.subr.mxu0 0.0
        %767 = vmatpush1.msra.mxu0 0.0
        %768 = vmatprep.subr.mxu0 0.0
        %769 = vmatpush1.msra.mxu0 0.0
        %770 = vmatprep.subr.mxu0 0.0
        %771 = vmatpush1.msra.mxu0 0.0
        %772 = vmatprep.subr.mxu0 0.0
        %773 = vmatpush1.msra.mxu0 0.0
        %774 = vmatprep.subr.mxu0 0.0
        %775 = vmatpush1.msra.mxu0 0.0
        %776 = vmatprep.subr.mxu0 0.0
        %777 = vmatpush1.msra.mxu0 0.0
        %778 = vmatprep.subr.mxu0 0.0
        %779 = vmatpush1.msra.mxu0 0.0
        %780 = vmatprep.subr.mxu0 0.0
        %781 = vmatpush1.msra.mxu0 0.0
        %782 = vmatprep.subr.mxu0 0.0
        %783 = vmatpush1.msra.mxu0 0.0
        %784 = vmatprep.subr.mxu0 0.0
        %785 = vmatpush1.msra.mxu0 0.0
        %786 = vmatprep.subr.mxu0 0.0
        %787 = vmatpush1.msra.mxu0 0.0
        %788 = vmatprep.subr.mxu0 0.0
        %789 = vmatpush1.msra.mxu0 0.0
        %790 = vmatprep.subr.mxu0 0.0
        %791 = vmatpush1.msra.mxu0 0.0
        %792 = vmatprep.subr.mxu0 0.0
        %793 = vmatpush1.msra.mxu0 0.0
        %794 = vmatprep.subr.mxu0 0.0
        %795 = vmatpush1.msra.mxu0 0.0
        %796 = vmatprep.subr.mxu0 0.0
        %797 = vmatpush1.msra.mxu0 0.0
        %798 = vmatprep.subr.mxu0 0.0
        %799 = vmatpush1.msra.mxu0 0.0
        %800 = vmatprep.subr.mxu0 0.0
        %801 = vmatpush1.msra.mxu0 0.0
        %802 = vmatprep.subr.mxu0 0.0
        %803 = vmatpush1.msra.mxu0 0.0
        %804 = vmatprep.mubr.f32.mxu0 0.0
        %805 = vmatmul.mubr.f32.gmra.mrb[0].mxu0 %v735
        %v806 = vpop.f32.mrb[0].mxu0
        %v807 = vadd.f32 0.0, %v806
        %v808 = vpop.f32.mrb[0].mxu0
        %v809 = vadd.f32 0.0, %v808
        %810 = vmatprep.mubr.f32.mxu0 0.0
        %811 = vmatmul.mubr.f32.gmra.mrb[0].mxu0 %v738
        %v812 = vpop.f32.mrb[0].mxu0
        %v813 = vadd.f32 0.0, %v812
        %v814 = vpop.f32.mrb[0].mxu0
        %v815 = vadd.f32 0.0, %v814
        %816 = vdwg.mxu0
        %817 = vmatprep.subr.mxu0 %v622
        %818 = vmatpush1.msra.mxu0 %v620
        %819 = vmatprep.subr.mxu0 %v628
        %820 = vmatpush1.msra.mxu0 %v626
        %821 = vmatprep.subr.mxu0 %v634
        %822 = vmatpush1.msra.mxu0 %v632
        %823 = vmatprep.subr.mxu0 %v640
        %824 = vmatpush1.msra.mxu0 %v638
        %825 = vmatprep.subr.mxu0 0.0
        %826 = vmatpush1.msra.mxu0 0.0
        %827 = vmatprep.subr.mxu0 0.0
        %828 = vmatpush1.msra.mxu0 0.0
        %829 = vmatprep.subr.mxu0 0.0
        %830 = vmatpush1.msra.mxu0 0.0
        %831 = vmatprep.subr.mxu0 0.0
        %832 = vmatpush1.msra.mxu0 0.0
        %833 = vmatprep.subr.mxu0 0.0
        %834 = vmatpush1.msra.mxu0 0.0
        %835 = vmatprep.subr.mxu0 0.0
        %836 = vmatpush1.msra.mxu0 0.0
        %837 = vmatprep.subr.mxu0 0.0
        %838 = vmatpush1.msra.mxu0 0.0
        %839 = vmatprep.subr.mxu0 0.0
        %840 = vmatpush1.msra.mxu0 0.0
        %841 = vmatprep.subr.mxu0 0.0
        %842 = vmatpush1.msra.mxu0 0.0
        %843 = vmatprep.subr.mxu0 0.0
        %844 = vmatpush1.msra.mxu0 0.0
        %845 = vmatprep.subr.mxu0 0.0
        %846 = vmatpush1.msra.mxu0 0.0
        %847 = vmatprep.subr.mxu0 0.0
        %848 = vmatpush1.msra.mxu0 0.0
        %849 = vmatprep.subr.mxu0 0.0
        %850 = vmatpush1.msra.mxu0 0.0
        %851 = vmatprep.subr.mxu0 0.0
        %852 = vmatpush1.msra.mxu0 0.0
        %853 = vmatprep.subr.mxu0 0.0
        %854 = vmatpush1.msra.mxu0 0.0
        %855 = vmatprep.subr.mxu0 0.0
        %856 = vmatpush1.msra.mxu0 0.0
        %857 = vmatprep.subr.mxu0 0.0
        %858 = vmatpush1.msra.mxu0 0.0
        %859 = vmatprep.subr.mxu0 0.0
        %860 = vmatpush1.msra.mxu0 0.0
        %861 = vmatprep.subr.mxu0 0.0
        %862 = vmatpush1.msra.mxu0 0.0
        %863 = vmatprep.subr.mxu0 0.0
        %864 = vmatpush1.msra.mxu0 0.0
        %865 = vmatprep.subr.mxu0 0.0
        %866 = vmatpush1.msra.mxu0 0.0
        %867 = vmatprep.subr.mxu0 0.0
        %868 = vmatpush1.msra.mxu0 0.0
        %869 = vmatprep.subr.mxu0 0.0
        %870 = vmatpush1.msra.mxu0 0.0
        %871 = vmatprep.subr.mxu0 0.0
        %872 = vmatpush1.msra.mxu0 0.0
        %873 = vmatprep.subr.mxu0 0.0
        %874 = vmatpush1.msra.mxu0 0.0
        %875 = vmatprep.subr.mxu0 0.0
        %876 = vmatpush1.msra.mxu0 0.0
        %877 = vmatprep.subr.mxu0 0.0
        %878 = vmatpush1.msra.mxu0 0.0
        %879 = vmatprep.subr.mxu0 0.0
        %880 = vmatpush1.msra.mxu0 0.0
        %881 = vmatprep.mubr.f32.mxu0 0.0
        %882 = vmatmul.mubr.f32.gmra.mrb[0].mxu0 %v735
        %v883 = vpop.f32.mrb[0].mxu0
        %v884 = vadd.f32 0.0, %v883
        %v885 = vpop.f32.mrb[0].mxu0
        %v886 = vadd.f32 0.0, %v885
        %887 = vmatprep.mubr.f32.mxu0 0.0
        %888 = vmatmul.mubr.f32.gmra.mrb[0].mxu0 %v738
        %v889 = vpop.f32.mrb[0].mxu0
        %v890 = vadd.f32 0.0, %v889
        %v891 = vpop.f32.mrb[0].mxu0
        %v892 = vadd.f32 0.0, %v891
        %893 = vdwg.mxu0
        %894 = vmatprep.subr.mxu0 %v711
        %895 = vmatpush1.msra.mxu0 %v709
        %896 = vmatprep.subr.mxu0 %v717
        %897 = vmatpush1.msra.mxu0 %v715
        %898 = vmatprep.subr.mxu0 %v723
        %899 = vmatpush1.msra.mxu0 %v721
        %900 = vmatprep.subr.mxu0 %v729
        %901 = vmatpush1.msra.mxu0 %v727
        %902 = vmatprep.subr.mxu0 0.0
        %903 = vmatpush1.msra.mxu0 0.0
        %904 = vmatprep.subr.mxu0 0.0
        %905 = vmatpush1.msra.mxu0 0.0
        %906 = vmatprep.subr.mxu0 0.0
        %907 = vmatpush1.msra.mxu0 0.0
        %908 = vmatprep.subr.mxu0 0.0
        %909 = vmatpush1.msra.mxu0 0.0
        %910 = vmatprep.subr.mxu0 0.0
        %911 = vmatpush1.msra.mxu0 0.0
        %912 = vmatprep.subr.mxu0 0.0
        %913 = vmatpush1.msra.mxu0 0.0
        %914 = vmatprep.subr.mxu0 0.0
        %915 = vmatpush1.msra.mxu0 0.0
        %916 = vmatprep.subr.mxu0 0.0
        %917 = vmatpush1.msra.mxu0 0.0
        %918 = vmatprep.subr.mxu0 0.0
        %919 = vmatpush1.msra.mxu0 0.0
        %920 = vmatprep.subr.mxu0 0.0
        %921 = vmatpush1.msra.mxu0 0.0
        %922 = vmatprep.subr.mxu0 0.0
        %923 = vmatpush1.msra.mxu0 0.0
        %924 = vmatprep.subr.mxu0 0.0
        %925 = vmatpush1.msra.mxu0 0.0
        %926 = vmatprep.subr.mxu0 0.0
        %927 = vmatpush1.msra.mxu0 0.0
        %928 = vmatprep.subr.mxu0 0.0
        %929 = vmatpush1.msra.mxu0 0.0
        %930 = vmatprep.subr.mxu0 0.0
        %931 = vmatpush1.msra.mxu0 0.0
        %932 = vmatprep.subr.mxu0 0.0
        %933 = vmatpush1.msra.mxu0 0.0
        %934 = vmatprep.subr.mxu0 0.0
        %935 = vmatpush1.msra.mxu0 0.0
        %936 = vmatprep.subr.mxu0 0.0
        %937 = vmatpush1.msra.mxu0 0.0
        %938 = vmatprep.subr.mxu0 0.0
        %939 = vmatpush1.msra.mxu0 0.0
        %940 = vmatprep.subr.mxu0 0.0
        %941 = vmatpush1.msra.mxu0 0.0
        %942 = vmatprep.subr.mxu0 0.0
        %943 = vmatpush1.msra.mxu0 0.0
        %944 = vmatprep.subr.mxu0 0.0
        %945 = vmatpush1.msra.mxu0 0.0
        %946 = vmatprep.subr.mxu0 0.0
        %947 = vmatpush1.msra.mxu0 0.0
        %948 = vmatprep.subr.mxu0 0.0
        %949 = vmatpush1.msra.mxu0 0.0
        %950 = vmatprep.subr.mxu0 0.0
        %951 = vmatpush1.msra.mxu0 0.0
        %952 = vmatprep.subr.mxu0 0.0
        %953 = vmatpush1.msra.mxu0 0.0
        %954 = vmatprep.subr.mxu0 0.0
        %955 = vmatpush1.msra.mxu0 0.0
        %956 = vmatprep.subr.mxu0 0.0
        %957 = vmatpush1.msra.mxu0 0.0
        %958 = vmatprep.mubr.f32.mxu0 0.0
        %959 = vmatmul.mubr.f32.gmra.mrb[0].mxu0 %v735
        %v960 = vpop.f32.mrb[0].mxu0
        %v961 = vadd.f32 0.0, %v960
        %v962 = vpop.f32.mrb[0].mxu0
        %v963 = vadd.f32 0.0, %v962
        %964 = vmatprep.mubr.f32.mxu0 0.0
        %965 = vmatmul.mubr.f32.gmra.mrb[0].mxu0 %v738
        %v966 = vpop.f32.mrb[0].mxu0
        %v967 = vadd.f32 0.0, %v966
        %v968 = vpop.f32.mrb[0].mxu0
        %v969 = vadd.f32 0.0, %v968
        %970 = vdwg.mxu0
        %971 = vst [vmem:[%s258] sm:$0xff] %v807
        %972 = vst [vmem:[%s258 + $0x8] sm:$0xff] %v809
        %973 = vst [vmem:[%s258 + $0x10] sm:$0xff] %v884
        %974 = vst [vmem:[%s258 + $0x18] sm:$0xff] %v886
        %975 = vst [vmem:[%s258 + $0x20] sm:$0xff] %v961
        %976 = vst [vmem:[%s258 + $0x28] sm:$0xff] %v963
        %977 = vst [vmem:[%s258 + $0x30] sm:$0xff] %v813
        %978 = vst [vmem:[%s258 + $0x38] sm:$0xff] %v815
        %979 = vst [vmem:[%s258 + $0x40] sm:$0xff] %v890
        %980 = vst [vmem:[%s258 + $0x48] sm:$0xff] %v892
        %981 = vst [vmem:[%s258 + $0x50] sm:$0xff] %v967
        %982 = vst [vmem:[%s258 + $0x58] sm:$0xff] %v969
        %s983 = sand.u32 %s128, 1
        %s984 = scalar_lea.sflag [#allocation4], %s983
        %s985 = sand.u32 %s128, 1
        %s986 = smul.addr %s985, 96
        %s987 = scalar_lea.vmem [#allocation8], %s986
        // Predicated region
        $region45: #{tpu_custom_call.1} parent=31 // pred_check
          %p988 = pneg %p138
        $region46: #{tpu_custom_call.1} parent=31 // pred_check_branch
          %990 = sbr.rel (%p988) target = $region48
        $region47: #{tpu_custom_call.1} parent=31 // pred_region
          %s991 = smul.u32 2, %s24
          %s992 = smul.u32 6, %s25
          %s994 = ssub.s32 1536, 1536
          %995 = vsyncadd %s984, %s994
          %s996 = smul.addr %s991, 6
          %s997 = sadd.s32 %s992, %s996
          %s998 = smul.addr %s997, 128
          %s999 = scalar_lea.hbm %s3, %s998
          %s1000 = sshll.u32 %s987, 4
          %s1001 = int_to_ptr.vmem [resolvable:$true] %s1000
          %1006 = dma.vmem_to_hbm [thread:$0]  %s1001, 1536, %s999, %s984, 768, 768, 48
        $region48: #{tpu_custom_call.1} parent=31 // pred_fallthru
          _
      $region32: #{tpu_custom_call.1} parent=5 // pred_fallthru
        _
      %p1007 = scmp.le.s32.totalorder 2, %s14
      // Predicated region
      $region49: #{tpu_custom_call.1} parent=5 // pred_check
        %p1008 = pneg %p1007
      $region50: #{tpu_custom_call.1} parent=5 // pred_check_branch
        %1010 = sbr.rel (%p1008) target = $region52
      $region51: #{tpu_custom_call.1} parent=5 // pred_region
        %s1011 = ssub.s32 %s14, 2
        // Predicated region
        $region53: #{tpu_custom_call.1} parent=51 // pred_check
          %p1012 = pneg %p144
        $region54: #{tpu_custom_call.1} parent=51 // pred_check_branch
          %1014 = sbr.rel (%p1012) target = $region56
        $region55: #{tpu_custom_call.1} parent=51 // pred_region
          %s1015 = sand.u32 %s129, 1
          %s1016 = scalar_lea.sflag [#allocation4], %s1015
          %s1017 = sand.u32 %s129, 1
          %s1018 = smul.addr %s1017, 96
          %s1019 = scalar_lea.vmem [#allocation8], %s1018
          %1020 = dma.done %s1016, 1536
        $region56: #{tpu_custom_call.1} parent=51 // pred_fallthru
          _
      $region52: #{tpu_custom_call.1} parent=5 // pred_fallthru
        _
    $region6: #{tpu_custom_call.1} parent=1 // loop_footer
      %s18 = sadd.s32 1, %s14
    $region7: #{tpu_custom_call.1} parent=1 // loop_footer_branch
      %13 = sbr.rel target = $region3
    $region8: #{tpu_custom_call.1} parent=1 // loop_exit
      _
    %1021 = vsyncpa [#allocation3], 1
    %s1022 = scalar_lea.sflag [#allocation3], 1
    %1023 = vsyncpa %s1022, 1
    %1024 = vsyncpa [#allocation6], 1
    %1025 = vsyncpa [#allocation4], 1
    %s1026 = scalar_lea.sflag [#allocation4], 1
    %1027 = vsyncpa %s1026, 1

</llo_original>
